<compile_context>
chip_gen: v6e
topology: v6e:2x2x1
jax: 0.10.0
libtpu: 0.0.40
codegen_flags: <defaults>
</compile_context>

<pallas_src>
import functools

import jax
import jax.numpy as jnp
from jax.experimental import pallas as pl
from jax.experimental.pallas import tpu as pltpu


def _ffn_kernel(x_ref, w1_ref, b1_ref, w2_ref, b2_ref, w3_ref, b3_ref, o_ref):
    """One (tile_rows, pack*F) batch tile through the 3-layer MLP.

    All three layers are MXU matmuls (block-diagonal packed weights); biases
    and ReLU run in f32 on the VPU.  No XLU work (no reduce, no transpose).
    """
    h = jnp.dot(x_ref[...], w1_ref[...], preferred_element_type=jnp.float32)
    h = jnp.maximum(h + b1_ref[...], 0.0)

    h = jnp.dot(h.astype(w2_ref.dtype), w2_ref[...],
                preferred_element_type=jnp.float32)
    h = jnp.maximum(h + b2_ref[...], 0.0)

    h = jnp.dot(h.astype(w3_ref.dtype), w3_ref[...],
                preferred_element_type=jnp.float32)
    o_ref[...] = jnp.maximum(h + b3_ref[...], 0.0).astype(o_ref.dtype)


def _block_diag(w, pack):
    """pack copies of w on the diagonal: (fi, fo) -> (pack*fi, pack*fo)."""
    return jnp.kron(jnp.eye(pack, dtype=w.dtype), w)


def _mlp_jnp(x, params):
    """Plain-XLA reference / ragged-tail path."""
    h = jnp.maximum(x @ params["w1"] + params["b1"], 0.0)
    h = jnp.maximum(h @ params["w2"] + params["b2"], 0.0)
    return jnp.maximum(h @ params["w3"] + params["b3"], 0.0)


@functools.partial(jax.jit, static_argnames=("tile_rows", "compute_dtype"))
def feed_forward_model(x, params, *, tile_rows=2048, compute_dtype=jnp.float32):
    """x: (B, input_shape).  params: w1,b1,w2,b2,w3,b3 with weights shaped
    (in_features, out_features) and biases (1, out_features).  Returns (B, 1) f32."""
    B, F = x.shape
    w1, b1 = params["w1"], params["b1"]
    w2, b2 = params["w2"], params["b2"]
    w3, b3 = params["w3"], params["b3"]
    h1, h2, h3 = w1.shape[1], w2.shape[1], w3.shape[1]  # 16, 32, 1

    # Lane-packing factor: pack samples so the packed input width is 128 lanes.
    pack = 128 // F if (F <= 128 and 128 % F == 0) else 1
    b_main = (B // pack) * pack

    outputs = []
    if b_main > 0:
        rows = b_main // pack
        fp, h1p, h2p, h3p = pack * F, pack * h1, pack * h2, pack * h3

        # Block-diagonal weights / lane-tiled biases (tiny; built once per call).
        w1p = _block_diag(w1, pack).astype(compute_dtype)
        w2p = _block_diag(w2, pack).astype(compute_dtype)
        w3p = _block_diag(w3, pack).astype(compute_dtype)
        b1p = jnp.tile(b1.reshape(1, h1), (1, pack)).astype(jnp.float32)
        b2p = jnp.tile(b2.reshape(1, h2), (1, pack)).astype(jnp.float32)
        b3p = jnp.tile(b3.reshape(1, h3), (1, pack)).astype(jnp.float32)

        # Free row-major view: `pack` consecutive samples per 128-lane row.
        # (For full bf16 benefit, callers should supply x already in bf16.)
        xp = x[:b_main].reshape(rows, fp).astype(compute_dtype)

        # Tile selection: large tiles for HBM efficiency; shrink when the
        # batch is small so num_tiles >= 2 (keeps both v7x TCs busy).  Pallas
        # masks the ragged boundary block -- no padded copy of x is made.
        tr = tile_rows
        if rows < 2 * tr:
            half = (rows + 1) // 2
            tr = max(8, ((half + 7) // 8) * 8)
        num_tiles = pl.cdiv(rows, tr)

        itemsize = jnp.dtype(compute_dtype).itemsize
        cost = pl.CostEstimate(
            flops=2 * rows * (fp * h1p + h1p * h2p + h2p * h3p),
            transcendentals=0,
            bytes_accessed=(rows * fp * itemsize            # x read
                            + rows * h3p * 4                # y write
                            + (fp * h1p + h1p * h2p + h2p * h3p) * itemsize
                            + (h1p + h2p + h3p) * 4),       # weights + biases
        )

        out_p = pl.pallas_call(
            _ffn_kernel,
            out_shape=jax.ShapeDtypeStruct((rows, h3p), jnp.float32),
            grid_spec=pltpu.PrefetchScalarGridSpec(
                num_scalar_prefetch=0,
                grid=(num_tiles,),
                in_specs=[
                    # x: streamed per batch tile (auto double-buffered).
                    pl.BlockSpec((tr, fp), lambda i: (i, 0)),
                    # Weights/biases: constant index_map -> VMEM-resident.
                    pl.BlockSpec((fp, h1p), lambda i: (0, 0)),
                    pl.BlockSpec((1, h1p), lambda i: (0, 0)),
                    pl.BlockSpec((h1p, h2p), lambda i: (0, 0)),
                    pl.BlockSpec((1, h2p), lambda i: (0, 0)),
                    pl.BlockSpec((h2p, h3p), lambda i: (0, 0)),
                    pl.BlockSpec((1, h3p), lambda i: (0, 0)),
                ],
                # Natural packed output: (tr, pack) per grid step, no relayout.
                out_specs=pl.BlockSpec((tr, h3p), lambda i: (i, 0)),
            ),
            compiler_params=pltpu.CompilerParams(
                dimension_semantics=("parallel",),      # megacore sharding on v7x
                vmem_limit_bytes=32 * 1024 * 1024,      # safe on v5e/v6e/v7x
            ),
            cost_estimate=cost,
        )(xp, w1p, b1p, w2p, b2p, w3p, b3p)

        # (rows, pack) flattens row-major back to original sample order.
        outputs.append(out_p.reshape(b_main, 1))

    if b_main < B:
        # Ragged tail (< pack samples): negligible work, done in plain XLA
        # instead of materializing a padded copy of x in HBM.
        outputs.append(_mlp_jnp(x[b_main:], params).astype(jnp.float32))

    return outputs[0] if len(outputs) == 1 else jnp.concatenate(outputs, axis=0)


def init_params(key, input_shape):
    """Deterministic parameter init (uniform, PyTorch-Linear-like scaling)."""
    ks = jax.random.split(key, 6)

    def lin(kw, kb, fan_in, fan_out):
        bound = 1.0 / jnp.sqrt(fan_in)
        w = jax.random.uniform(kw, (fan_in, fan_out), jnp.float32, -bound, bound)
        b = jax.random.uniform(kb, (1, fan_out), jnp.float32, -bound, bound)
        return w, b

    w1, b1 = lin(ks[0], ks[1], input_shape, 16)
    w2, b2 = lin(ks[2], ks[3], 16, 32)
    w3, b3 = lin(ks[4], ks[5], 32, 1)
    return {"w1": w1, "b1": b1, "w2": w2, "b2": b2, "w3": w3, "b3": b3}


if __name__ == "__main__":
    key = jax.random.PRNGKey(0)
    k_x, k_p = jax.random.split(key)

    batch = 1000        # not tile-aligned -> exercises the masked boundary block
    input_shape = 32    # -> pack = 4 samples per 128-lane row

    x = jax.random.normal(k_x, (batch, input_shape), jnp.float32)
    params = init_params(k_p, input_shape)
    ref = _mlp_jnp(x, params)

    # f32 compute path.  Tolerance covers default-precision MXU matmul passes
    # on both the kernel and the XLA reference side.
    out = jax.block_until_ready(feed_forward_model(x, params))
    assert out.shape == (batch, 1), out.shape
    assert jnp.allclose(out, ref, atol=1e-2, rtol=1e-2)

    # bf16 compute path: halves HBM traffic for this memory-bound kernel.
    out_bf16 = jax.block_until_ready(
        feed_forward_model(x, params, compute_dtype=jnp.bfloat16))
    assert out_bf16.shape == (batch, 1), out_bf16.shape
    assert jnp.allclose(out_bf16, ref, atol=7e-2, rtol=7e-2)

    print("KERNEL_OK")
</pallas_src>

<mosaic_0001>
module attributes {stable_mosaic.version = 11 : i64} {
  func.func @_ffn_kernel(%arg0: i32, %arg1: memref<128x128xf32, #tpu.memory_space<vmem>>, %arg2: memref<128x64xf32, #tpu.memory_space<vmem>>, %arg3: memref<1x64xf32, #tpu.memory_space<vmem>>, %arg4: memref<64x128xf32, #tpu.memory_space<vmem>>, %arg5: memref<1x128xf32, #tpu.memory_space<vmem>>, %arg6: memref<128x4xf32, #tpu.memory_space<vmem>>, %arg7: memref<1x4xf32, #tpu.memory_space<vmem>>, %arg8: memref<128x4xf32, #tpu.memory_space<vmem>>) attributes {dimension_semantics = [#tpu.dimension_semantics<parallel>], iteration_bounds = array<i64: 2>, scalar_prefetch = 0 : i64, scratch_operands = 0 : i64, tpu.core_type = #tpu.core_type<tc>, window_params = [{transform_indices = @transform_0, window_bounds = array<i64: 128, 128>}, {pipeline_mode = #tpu.pipeline_mode<synchronous>, transform_indices = @transform_1, window_bounds = array<i64: 128, 64>}, {pipeline_mode = #tpu.pipeline_mode<synchronous>, transform_indices = @transform_2, window_bounds = array<i64: 1, 64>}, {pipeline_mode = #tpu.pipeline_mode<synchronous>, transform_indices = @transform_3, window_bounds = array<i64: 64, 128>}, {pipeline_mode = #tpu.pipeline_mode<synchronous>, transform_indices = @transform_4, window_bounds = array<i64: 1, 128>}, {pipeline_mode = #tpu.pipeline_mode<synchronous>, transform_indices = @transform_5, window_bounds = array<i64: 128, 4>}, {pipeline_mode = #tpu.pipeline_mode<synchronous>, transform_indices = @transform_6, window_bounds = array<i64: 1, 4>}, {transform_indices = @transform_7, window_bounds = array<i64: 128, 4>}]} {
    %c0 = arith.constant 0 : index
    %c0_0 = arith.constant 0 : index
    %0 = vector.load %arg1[%c0, %c0_0] : memref<128x128xf32, #tpu.memory_space<vmem>>, vector<128x128xf32>
    %c0_1 = arith.constant 0 : index
    %c0_2 = arith.constant 0 : index
    %1 = vector.load %arg2[%c0_1, %c0_2] : memref<128x64xf32, #tpu.memory_space<vmem>>, vector<128x64xf32>
    %cst = arith.constant dense<0.000000e+00> : vector<128x64xf32>
    %2 = tpu.matmul %0, %1, %cst {dimension_numbers = #tpu.dot_dimension_numbers<[1], [0], [0], [1], [0, 0, 1, 1], [], []>} : vector<128x128xf32>, vector<128x64xf32>, vector<128x64xf32> -> vector<128x64xf32>
    %c0_3 = arith.constant 0 : index
    %c0_4 = arith.constant 0 : index
    %3 = vector.load %arg3[%c0_3, %c0_4] : memref<1x64xf32, #tpu.memory_space<vmem>>, vector<1x64xf32>
    %4 = vector.broadcast %3 : vector<1x64xf32> to vector<128x64xf32>
    %5 = arith.addf %2, %4 : vector<128x64xf32>
    %cst_5 = arith.constant 0.000000e+00 : f32
    %6 = vector.broadcast %cst_5 : f32 to vector<128x64xf32>
    %7 = arith.maximumf %5, %6 : vector<128x64xf32>
    %c0_6 = arith.constant 0 : index
    %c0_7 = arith.constant 0 : index
    %8 = vector.load %arg4[%c0_6, %c0_7] : memref<64x128xf32, #tpu.memory_space<vmem>>, vector<64x128xf32>
    %cst_8 = arith.constant dense<0.000000e+00> : vector<128x128xf32>
    %9 = tpu.matmul %7, %8, %cst_8 {dimension_numbers = #tpu.dot_dimension_numbers<[1], [0], [0], [1], [0, 0, 1, 1], [], []>} : vector<128x64xf32>, vector<64x128xf32>, vector<128x128xf32> -> vector<128x128xf32>
    %c0_9 = arith.constant 0 : index
    %c0_10 = arith.constant 0 : index
    %10 = vector.load %arg5[%c0_9, %c0_10] : memref<1x128xf32, #tpu.memory_space<vmem>>, vector<1x128xf32>
    %11 = vector.broadcast %10 : vector<1x128xf32> to vector<128x128xf32>
    %12 = arith.addf %9, %11 : vector<128x128xf32>
    %cst_11 = arith.constant 0.000000e+00 : f32
    %13 = vector.broadcast %cst_11 : f32 to vector<128x128xf32>
    %14 = arith.maximumf %12, %13 : vector<128x128xf32>
    %c0_12 = arith.constant 0 : index
    %c0_13 = arith.constant 0 : index
    %15 = vector.load %arg6[%c0_12, %c0_13] : memref<128x4xf32, #tpu.memory_space<vmem>>, vector<128x4xf32>
    %cst_14 = arith.constant dense<0.000000e+00> : vector<128x4xf32>
    %16 = tpu.matmul %14, %15, %cst_14 {dimension_numbers = #tpu.dot_dimension_numbers<[1], [0], [0], [1], [0, 0, 1, 1], [], []>} : vector<128x128xf32>, vector<128x4xf32>, vector<128x4xf32> -> vector<128x4xf32>
    %c0_15 = arith.constant 0 : index
    %c0_16 = arith.constant 0 : index
    %17 = vector.load %arg7[%c0_15, %c0_16] : memref<1x4xf32, #tpu.memory_space<vmem>>, vector<1x4xf32>
    %18 = vector.broadcast %17 : vector<1x4xf32> to vector<128x4xf32>
    %19 = arith.addf %16, %18 : vector<128x4xf32>
    %cst_17 = arith.constant 0.000000e+00 : f32
    %20 = vector.broadcast %cst_17 : f32 to vector<128x4xf32>
    %21 = arith.maximumf %19, %20 : vector<128x4xf32>
    %c0_18 = arith.constant 0 : index
    %c0_19 = arith.constant 0 : index
    %22 = vector.load %arg8[%c0_18, %c0_19] : memref<128x4xf32, #tpu.memory_space<vmem>>, vector<128x4xf32>
    tpu.vector_store %arg8[%c0_18, %c0_19], %21 {strides = array<i32>} : memref<128x4xf32, #tpu.memory_space<vmem>>, vector<128x4xf32>,
    return
  }
  func.func @transform_0(%arg0: i32) -> (i32, i32) {
    %c0_i32 = arith.constant 0 : i32
    %c0_i32_0 = arith.constant 0 : i32
    return %arg0, %c0_i32 : i32, i32
  }
  func.func @transform_1(%arg0: i32) -> (i32, i32) {
    %c0_i32 = arith.constant 0 : i32
    %c0_i32_0 = arith.constant 0 : i32
    %c0_i32_1 = arith.constant 0 : i32
    return %c0_i32, %c0_i32_0 : i32, i32
  }
  func.func @transform_2(%arg0: i32) -> (i32, i32) {
    %c0_i32 = arith.constant 0 : i32
    %c0_i32_0 = arith.constant 0 : i32
    %c0_i32_1 = arith.constant 0 : i32
    return %c0_i32, %c0_i32_0 : i32, i32
  }
  func.func @transform_3(%arg0: i32) -> (i32, i32) {
    %c0_i32 = arith.constant 0 : i32
    %c0_i32_0 = arith.constant 0 : i32
    %c0_i32_1 = arith.constant 0 : i32
    return %c0_i32, %c0_i32_0 : i32, i32
  }
  func.func @transform_4(%arg0: i32) -> (i32, i32) {
    %c0_i32 = arith.constant 0 : i32
    %c0_i32_0 = arith.constant 0 : i32
    %c0_i32_1 = arith.constant 0 : i32
    return %c0_i32, %c0_i32_0 : i32, i32
  }
  func.func @transform_5(%arg0: i32) -> (i32, i32) {
    %c0_i32 = arith.constant 0 : i32
    %c0_i32_0 = arith.constant 0 : i32
    %c0_i32_1 = arith.constant 0 : i32
    return %c0_i32, %c0_i32_0 : i32, i32
  }
  func.func @transform_6(%arg0: i32) -> (i32, i32) {
    %c0_i32 = arith.constant 0 : i32
    %c0_i32_0 = arith.constant 0 : i32
    %c0_i32_1 = arith.constant 0 : i32
    return %c0_i32, %c0_i32_0 : i32, i32
  }
  func.func @transform_7(%arg0: i32) -> (i32, i32) {
    %c0_i32 = arith.constant 0 : i32
    %c0_i32_0 = arith.constant 0 : i32
    return %arg0, %c0_i32 : i32, i32
  }
}

</mosaic_0001>

<llo_original>
// kernel: feed_forward_model.1
$region0: #{feed_forward_model.1}
  #allocation0 [shape = 'u32[]', space=smem, size = 0x4, offset = 0x4, fixed_abs, tag = 'smem constant byte address 0x4 - core index']
  #allocation1 [shape = 'u32[144,128]{1,0:T(1,128)}', space=vmem, size = 0x12000, scoped, tag = 'internal scratch']
  %s0 = inlined_call_operand.vmem [shape: f32[250,128], index: 0, kind: input, shape index: {}]
  %s1 = inlined_call_operand.vmem [shape: f32[128,64], index: 1, kind: input, shape index: {}]
  %s2 = inlined_call_operand.vmem [shape: f32[1,64], index: 2, kind: input, shape index: {}]
  %s3 = inlined_call_operand.vmem [shape: f32[64,128], index: 3, kind: input, shape index: {}]
  %s4 = inlined_call_operand.vmem [shape: f32[1,128], index: 4, kind: input, shape index: {}]
  %s5 = inlined_call_operand.vmem [shape: f32[128,4], index: 5, kind: input, shape index: {}]
  %s6 = inlined_call_operand.vmem [shape: f32[1,4], index: 6, kind: input, shape index: {}]
  %s7 = inlined_call_operand.vmem [shape: f32[250,4], index: 7, kind: output, shape index: {}]
  %s8 = sld [smem:[#allocation0]]
  $region61: #{feed_forward_model.1} parent=0
    _
  %s10 = ssub.s32 1, %s8
  %s11 = scalar_select 0, %s10, %s8
  loop: start=0, step=1, limit=4
  $region2: #{feed_forward_model.1} parent=0 // loop_pre_header
    _
  $region3: #{feed_forward_model.1} parent=0 // loop_header
    %s13 = sphi 0, %s17
    %p14 = scmp.ge.s32.totalorder %s13, 4
    %s23 = sphi 0, %s25
    %s26 = sphi 0, %s23
    %s27 = sphi 0, %s26
    %s43 = sphi 0, %s27
    %s47 = sphi 0, %s47
    %s49 = sphi 0, %s47
    %s50 = sphi 0, %s49
    %s64 = sphi 0, %s50
    %s68 = sphi 0, %s68
    %s70 = sphi 0, %s68
    %s71 = sphi 0, %s70
    %s85 = sphi 0, %s71
    %s89 = sphi 0, %s89
    %s91 = sphi 0, %s89
    %s92 = sphi 0, %s91
    %s106 = sphi 0, %s92
    %s110 = sphi 0, %s110
    %s112 = sphi 0, %s110
    %s113 = sphi 0, %s112
    %s127 = sphi 0, %s113
    %s131 = sphi 0, %s131
    %s133 = sphi 0, %s131
    %s134 = sphi 0, %s133
    %s148 = sphi 0, %s134
    %s152 = sphi 0, %s152
    %s154 = sphi 0, %s152
    %s155 = sphi 0, %s154
    %s169 = sphi 0, %s155
    %s175 = sphi 0, %s177
    %s178 = sphi 0, %s175
    %s179 = sphi 0, %s178
    %s195 = sphi 0, %s179
  $region4: #{feed_forward_model.1} parent=0 // loop_header_branch
    %16 = sbr.rel (%p14) target = $region8
  $region5: #{feed_forward_model.1} parent=0 // loop_body
    %s18 = ssub.s32 %s13, 1
    %s19 = ssub.s32 %s13, 2
    %s20 = sadd.s32 %s13, 1
    %s21 = ssub.s32 %s13, %s20
    %p22 = scmp.eq.s32.totalorder %s21, 0
    %s24 = sadd.s32 %s23, 1
    %s25 = scalar_select %p22, %s23, %s24
    %p28 = pneg %p22
    %p29 = scmp.eq.s32.totalorder %s13, 1
    %p30 = por %p28, %p29
    %p31 = scmp.ne.s32.totalorder %s23, %s26
    %p32 = scmp.eq.s32.totalorder %s13, 0
    %p33 = por %p31, %p32
    %p34 = scmp.ne.s32.totalorder %s23, %s26
    %p35 = scmp.eq.s32.totalorder %s18, 1
    %p36 = por %p34, %p35
    %p37 = scmp.ne.s32.totalorder %s26, %s27
    %p38 = scmp.eq.s32.totalorder %s18, 0
    %p39 = por %p37, %p38
    %p40 = scmp.ne.s32.totalorder %s26, %s27
    %p41 = scmp.eq.s32.totalorder %s19, 1
    %p42 = por %p40, %p41
    %p44 = scmp.ne.s32.totalorder %s27, %s43
    %p45 = scmp.eq.s32.totalorder %s19, 0
    %p46 = por %p44, %p45
    %s48 = sadd.s32 %s47, 1
    %p51 = scmp.eq.s32.totalorder %s13, 1
    %p52 = scmp.ne.s32.totalorder %s47, %s49
    %p53 = scmp.eq.s32.totalorder %s13, 0
    %p54 = por %p52, %p53
    %p55 = scmp.ne.s32.totalorder %s47, %s49
    %p56 = scmp.eq.s32.totalorder %s18, 1
    %p57 = por %p55, %p56
    %p58 = scmp.ne.s32.totalorder %s49, %s50
    %p59 = scmp.eq.s32.totalorder %s18, 0
    %p60 = por %p58, %p59
    %p61 = scmp.ne.s32.totalorder %s49, %s50
    %p62 = scmp.eq.s32.totalorder %s19, 1
    %p63 = por %p61, %p62
    %p65 = scmp.ne.s32.totalorder %s50, %s64
    %p66 = scmp.eq.s32.totalorder %s19, 0
    %p67 = por %p65, %p66
    %s69 = sadd.s32 %s68, 1
    %p72 = scmp.eq.s32.totalorder %s13, 1
    %p73 = scmp.ne.s32.totalorder %s68, %s70
    %p74 = scmp.eq.s32.totalorder %s13, 0
    %p75 = por %p73, %p74
    %p76 = scmp.ne.s32.totalorder %s68, %s70
    %p77 = scmp.eq.s32.totalorder %s18, 1
    %p78 = por %p76, %p77
    %p79 = scmp.ne.s32.totalorder %s70, %s71
    %p80 = scmp.eq.s32.totalorder %s18, 0
    %p81 = por %p79, %p80
    %p82 = scmp.ne.s32.totalorder %s70, %s71
    %p83 = scmp.eq.s32.totalorder %s19, 1
    %p84 = por %p82, %p83
    %p86 = scmp.ne.s32.totalorder %s71, %s85
    %p87 = scmp.eq.s32.totalorder %s19, 0
    %p88 = por %p86, %p87
    %s90 = sadd.s32 %s89, 1
    %p93 = scmp.eq.s32.totalorder %s13, 1
    %p94 = scmp.ne.s32.totalorder %s89, %s91
    %p95 = scmp.eq.s32.totalorder %s13, 0
    %p96 = por %p94, %p95
    %p97 = scmp.ne.s32.totalorder %s89, %s91
    %p98 = scmp.eq.s32.totalorder %s18, 1
    %p99 = por %p97, %p98
    %p100 = scmp.ne.s32.totalorder %s91, %s92
    %p101 = scmp.eq.s32.totalorder %s18, 0
    %p102 = por %p100, %p101
    %p103 = scmp.ne.s32.totalorder %s91, %s92
    %p104 = scmp.eq.s32.totalorder %s19, 1
    %p105 = por %p103, %p104
    %p107 = scmp.ne.s32.totalorder %s92, %s106
    %p108 = scmp.eq.s32.totalorder %s19, 0
    %p109 = por %p107, %p108
    %s111 = sadd.s32 %s110, 1
    %p114 = scmp.eq.s32.totalorder %s13, 1
    %p115 = scmp.ne.s32.totalorder %s110, %s112
    %p116 = scmp.eq.s32.totalorder %s13, 0
    %p117 = por %p115, %p116
    %p118 = scmp.ne.s32.totalorder %s110, %s112
    %p119 = scmp.eq.s32.totalorder %s18, 1
    %p120 = por %p118, %p119
    %p121 = scmp.ne.s32.totalorder %s112, %s113
    %p122 = scmp.eq.s32.totalorder %s18, 0
    %p123 = por %p121, %p122
    %p124 = scmp.ne.s32.totalorder %s112, %s113
    %p125 = scmp.eq.s32.totalorder %s19, 1
    %p126 = por %p124, %p125
    %p128 = scmp.ne.s32.totalorder %s113, %s127
    %p129 = scmp.eq.s32.totalorder %s19, 0
    %p130 = por %p128, %p129
    %s132 = sadd.s32 %s131, 1
    %p135 = scmp.eq.s32.totalorder %s13, 1
    %p136 = scmp.ne.s32.totalorder %s131, %s133
    %p137 = scmp.eq.s32.totalorder %s13, 0
    %p138 = por %p136, %p137
    %p139 = scmp.ne.s32.totalorder %s131, %s133
    %p140 = scmp.eq.s32.totalorder %s18, 1
    %p141 = por %p139, %p140
    %p142 = scmp.ne.s32.totalorder %s133, %s134
    %p143 = scmp.eq.s32.totalorder %s18, 0
    %p144 = por %p142, %p143
    %p145 = scmp.ne.s32.totalorder %s133, %s134
    %p146 = scmp.eq.s32.totalorder %s19, 1
    %p147 = por %p145, %p146
    %p149 = scmp.ne.s32.totalorder %s134, %s148
    %p150 = scmp.eq.s32.totalorder %s19, 0
    %p151 = por %p149, %p150
    %s153 = sadd.s32 %s152, 1
    %p156 = scmp.eq.s32.totalorder %s13, 1
    %p157 = scmp.ne.s32.totalorder %s152, %s154
    %p158 = scmp.eq.s32.totalorder %s13, 0
    %p159 = por %p157, %p158
    %p160 = scmp.ne.s32.totalorder %s152, %s154
    %p161 = scmp.eq.s32.totalorder %s18, 1
    %p162 = por %p160, %p161
    %p163 = scmp.ne.s32.totalorder %s154, %s155
    %p164 = scmp.eq.s32.totalorder %s18, 0
    %p165 = por %p163, %p164
    %p166 = scmp.ne.s32.totalorder %s154, %s155
    %p167 = scmp.eq.s32.totalorder %s19, 1
    %p168 = por %p166, %p167
    %p170 = scmp.ne.s32.totalorder %s155, %s169
    %p171 = scmp.eq.s32.totalorder %s19, 0
    %p172 = por %p170, %p171
    %s173 = ssub.s32 %s13, %s20
    %p174 = scmp.eq.s32.totalorder %s173, 0
    %s176 = sadd.s32 %s175, 1
    %s177 = scalar_select %p174, %s175, %s176
    %p180 = pneg %p174
    %p181 = scmp.eq.s32.totalorder %s13, 1
    %p182 = por %p180, %p181
    %p183 = scmp.ne.s32.totalorder %s175, %s178
    %p184 = scmp.eq.s32.totalorder %s13, 0
    %p185 = por %p183, %p184
    %p186 = scmp.ne.s32.totalorder %s175, %s178
    %p187 = scmp.eq.s32.totalorder %s18, 1
    %p188 = por %p186, %p187
    %p189 = scmp.ne.s32.totalorder %s178, %s179
    %p190 = scmp.eq.s32.totalorder %s18, 0
    %p191 = por %p189, %p190
    %p192 = scmp.ne.s32.totalorder %s178, %s179
    %p193 = scmp.eq.s32.totalorder %s19, 1
    %p194 = por %p192, %p193
    %p196 = scmp.ne.s32.totalorder %s179, %s195
    %p197 = scmp.eq.s32.totalorder %s19, 0
    %p198 = por %p196, %p197
    %p199 = scmp.le.s32.totalorder 1, %s13
    %p200 = scmp.lt.s32.totalorder %s13, 3
    %p201 = pnand %p199, %p200
    %p202 = pneg %p201
    // Predicated region
    $region9: #{feed_forward_model.1} parent=5 // pred_check
      _
    $region10: #{feed_forward_model.1} parent=5 // pred_check_branch
      %204 = sbr.rel (%p201) target = $region12
    $region11: #{feed_forward_model.1} parent=5 // pred_region
      %s205 = ssub.s32 %s13, 1
      // Predicated region
      $region13: #{feed_forward_model.1} parent=11 // pred_check
        %p206 = pneg %p60
      $region14: #{feed_forward_model.1} parent=11 // pred_check_branch
        %208 = sbr.rel (%p206) target = $region16
      $region15: #{feed_forward_model.1} parent=11 // pred_region
        _
      $region16: #{feed_forward_model.1} parent=11 // pred_fallthru
        _
      // Predicated region
      $region17: #{feed_forward_model.1} parent=11 // pred_check
        %p209 = pneg %p81
      $region18: #{feed_forward_model.1} parent=11 // pred_check_branch
        %211 = sbr.rel (%p209) target = $region20
      $region19: #{feed_forward_model.1} parent=11 // pred_region
        _
      $region20: #{feed_forward_model.1} parent=11 // pred_fallthru
        _
      // Predicated region
      $region21: #{feed_forward_model.1} parent=11 // pred_check
        %p212 = pneg %p102
      $region22: #{feed_forward_model.1} parent=11 // pred_check_branch
        %214 = sbr.rel (%p212) target = $region24
      $region23: #{feed_forward_model.1} parent=11 // pred_region
        _
      $region24: #{feed_forward_model.1} parent=11 // pred_fallthru
        _
      // Predicated region
      $region25: #{feed_forward_model.1} parent=11 // pred_check
        %p215 = pneg %p123
      $region26: #{feed_forward_model.1} parent=11 // pred_check_branch
        %217 = sbr.rel (%p215) target = $region28
      $region27: #{feed_forward_model.1} parent=11 // pred_region
        _
      $region28: #{feed_forward_model.1} parent=11 // pred_fallthru
        _
      // Predicated region
      $region29: #{feed_forward_model.1} parent=11 // pred_check
        %p218 = pneg %p144
      $region30: #{feed_forward_model.1} parent=11 // pred_check_branch
        %220 = sbr.rel (%p218) target = $region32
      $region31: #{feed_forward_model.1} parent=11 // pred_region
        _
      $region32: #{feed_forward_model.1} parent=11 // pred_fallthru
        _
      // Predicated region
      $region33: #{feed_forward_model.1} parent=11 // pred_check
        %p221 = pneg %p165
      $region34: #{feed_forward_model.1} parent=11 // pred_check_branch
        %223 = sbr.rel (%p221) target = $region36
      $region35: #{feed_forward_model.1} parent=11 // pred_region
        _
      $region36: #{feed_forward_model.1} parent=11 // pred_fallthru
        _
    $region12: #{feed_forward_model.1} parent=5 // pred_fallthru
      _
    %p224 = scmp.lt.s32.totalorder %s13, 2
    // Predicated region
    $region37: #{feed_forward_model.1} parent=5 // pred_check
      %p225 = pneg %p224
    $region38: #{feed_forward_model.1} parent=5 // pred_check_branch
      %227 = sbr.rel (%p225) target = $region40
    $region39: #{feed_forward_model.1} parent=5 // pred_region
      // Predicated region
      $region41: #{feed_forward_model.1} parent=39 // pred_check
        %p228 = pneg %p33
      $region42: #{feed_forward_model.1} parent=39 // pred_check_branch
        %230 = sbr.rel (%p228) target = $region44
      $region43: #{feed_forward_model.1} parent=39 // pred_region
        %s231 = smul.u32 16, %s13
        %p232 = scmp.lt.s32.totalorder %s231, 31
        %s233 = scalar_select %p232, %s231, 31
        %s234 = smul.addr %s233, 8
        %s235 = scalar_lea.vmem %s0, %s234
        %s236 = smul.u32 16, %s13
      $region44: #{feed_forward_model.1} parent=39 // pred_fallthru
        _
    $region40: #{feed_forward_model.1} parent=5 // pred_fallthru
      _
    %p237 = scmp.le.s32.totalorder 1, %s13
    %p238 = scmp.lt.s32.totalorder %s13, 3
    %p239 = pnand %p237, %p238
    %p240 = pneg %p239
    // Predicated region
    $region45: #{feed_forward_model.1} parent=5 // pred_check
      _
    $region46: #{feed_forward_model.1} parent=5 // pred_check_branch
      %242 = sbr.rel (%p239) target = $region48
    $region47: #{feed_forward_model.1} parent=5 // pred_region
      %s243 = ssub.s32 %s13, 1
      %s244 = smul.u32 16, %s18
      %p245 = scmp.lt.s32.totalorder %s244, 31
      %s246 = scalar_select %p245, %s244, 31
      %s247 = smul.addr %s246, 8
      %s248 = scalar_lea.vmem %s0, %s247
      %p249 = pneg %p39
      %p250 = pneg %p36
      %p251 = pneg %p60
      %p252 = pneg %p57
      %p253 = pneg %p81
      %p254 = pneg %p78
      %p255 = pneg %p102
      %p256 = pneg %p99
      %p257 = pneg %p123
      %p258 = pneg %p120
      %p259 = pneg %p144
      %p260 = pneg %p141
      %p261 = pneg %p165
      %p262 = pneg %p162
      %p263 = pneg %p191
      %p264 = pneg %p188
      %s265 = smul.u32 16, %s18
      %p266 = scmp.lt.s32.totalorder %s265, 31
      %s267 = scalar_select %p266, %s265, 31
      %s268 = smul.addr %s267, 8
      %s269 = scalar_lea.vmem %s7, %s268
      %s270 = smul.u32 16, %s18
      %p271 = scmp.lt.s32.totalorder %s270, 31
      %s272 = scalar_select %p271, %s270, 31
      %s273 = smul.addr %s272, 8
      %s274 = scalar_lea.vmem %s0, %s273
      %s275 = smul.u32 16, %s18
      %s276 = smul.u32 16, %s18
      %p277 = scmp.lt.s32.totalorder %s276, 31
      %s278 = scalar_select %p277, %s276, 31
      %s279 = smul.addr %s278, 8
      %s280 = scalar_lea.vmem %s7, %s279
      %s281 = smul.u32 16, %s18
      %v282 = vld [vmem:[%s274] sm:$0xff]
      %v283 = vld [vmem:[%s274 + $0x8] sm:$0xff]
      %v284 = vld [vmem:[%s274 + $0x10] sm:$0xff]
      %v285 = vld [vmem:[%s274 + $0x18] sm:$0xff]
      %v286 = vld [vmem:[%s274 + $0x20] sm:$0xff]
      %v287 = vld [vmem:[%s274 + $0x28] sm:$0xff]
      %v288 = vld [vmem:[%s274 + $0x30] sm:$0xff]
      %v289 = vld [vmem:[%s274 + $0x38] sm:$0xff]
      %v290 = vld [vmem:[%s274 + $0x40] sm:$0xff]
      %v291 = vld [vmem:[%s274 + $0x48] sm:$0xff]
      %v292 = vld [vmem:[%s274 + $0x50] sm:$0xff]
      %v293 = vld [vmem:[%s274 + $0x58] sm:$0xff]
      %v294 = vld [vmem:[%s274 + $0x60] sm:$0xff]
      %v295 = vld [vmem:[%s274 + $0x68] sm:$0xff]
      %v296 = vld [vmem:[%s274 + $0x70] sm:$0xff]
      %v297 = vld [vmem:[%s274 + $0x78] sm:$0xff]
      %v298 = vld [vmem:[%s1] sm:$0xff]
      %v299 = vld [vmem:[%s1 + $0x8] sm:$0xff]
      %v300 = vld [vmem:[%s1 + $0x10] sm:$0xff]
      %v301 = vld [vmem:[%s1 + $0x18] sm:$0xff]
      %v302 = vld [vmem:[%s1 + $0x20] sm:$0xff]
      %v303 = vld [vmem:[%s1 + $0x28] sm:$0xff]
      %v304 = vld [vmem:[%s1 + $0x30] sm:$0xff]
      %v305 = vld [vmem:[%s1 + $0x38] sm:$0xff]
      %v306 = vld [vmem:[%s1 + $0x40] sm:$0xff]
      %v307 = vld [vmem:[%s1 + $0x48] sm:$0xff]
      %v308 = vld [vmem:[%s1 + $0x50] sm:$0xff]
      %v309 = vld [vmem:[%s1 + $0x58] sm:$0xff]
      %v310 = vld [vmem:[%s1 + $0x60] sm:$0xff]
      %v311 = vld [vmem:[%s1 + $0x68] sm:$0xff]
      %v312 = vld [vmem:[%s1 + $0x70] sm:$0xff]
      %v313 = vld [vmem:[%s1 + $0x78] sm:$0xff]
      %v314 = vld [vmem:[%s2] sm:$0x1]
      %v316 = vlaneseq
      %v317 = vshrl.u32 %v316, 7
      %v318 = vsub.s32 0, %v317
      %v319 = vrot.slane %v314, %v318
      %321 = vmatprep.subr.mxu0 0.0
      %322 = vmatpush1.msra.mxu0 %v313
      %323 = vmatprep.subr.mxu0 0.0
      %324 = vmatpush1.msra.mxu0 %v312
      %325 = vmatprep.subr.mxu0 0.0
      %326 = vmatpush1.msra.mxu0 %v311
      %327 = vmatprep.subr.mxu0 0.0
      %328 = vmatpush1.msra.mxu0 %v310
      %329 = vmatprep.subr.mxu0 0.0
      %330 = vmatpush1.msra.mxu0 %v309
      %331 = vmatprep.subr.mxu0 0.0
      %332 = vmatpush1.msra.mxu0 %v308
      %333 = vmatprep.subr.mxu0 0.0
      %334 = vmatpush1.msra.mxu0 %v307
      %335 = vmatprep.subr.mxu0 0.0
      %336 = vmatpush1.msra.mxu0 %v306
      %337 = vmatprep.subr.mxu0 0.0
      %338 = vmatpush1.msra.mxu0 %v305
      %339 = vmatprep.subr.mxu0 0.0
      %340 = vmatpush1.msra.mxu0 %v304
      %341 = vmatprep.subr.mxu0 0.0
      %342 = vmatpush1.msra.mxu0 %v303
      %343 = vmatprep.subr.mxu0 0.0
      %344 = vmatpush1.msra.mxu0 %v302
      %345 = vmatprep.subr.mxu0 0.0
      %346 = vmatpush1.msra.mxu0 %v301
      %347 = vmatprep.subr.mxu0 0.0
      %348 = vmatpush1.msra.mxu0 %v300
      %349 = vmatprep.subr.mxu0 0.0
      %350 = vmatpush1.msra.mxu0 %v299
      %351 = vmatprep.subr.mxu0 0.0
      %352 = vmatpush1.msra.mxu0 %v298
      %353 = vmatprep.subr.mxu0 0.0
      %354 = vmatpush2.msra.mxu0 0.0
      %355 = vmatprep.subr.mxu0 0.0
      %356 = vmatpush2.msra.mxu0 0.0
      %357 = vmatprep.subr.mxu0 0.0
      %358 = vmatpush2.msra.mxu0 0.0
      %359 = vmatprep.subr.mxu0 0.0
      %360 = vmatpush2.msra.mxu0 0.0
      %361 = vmatprep.subr.mxu0 0.0
      %362 = vmatpush2.msra.mxu0 0.0
      %363 = vmatprep.subr.mxu0 0.0
      %364 = vmatpush2.msra.mxu0 0.0
      %365 = vmatprep.subr.mxu0 0.0
      %366 = vmatpush2.msra.mxu0 0.0
      %367 = vmatprep.subr.mxu0 0.0
      %368 = vmatpush2.msra.mxu0 0.0
      %369 = vmatprep.subr.mxu0 0.0
      %370 = vmatpush2.msra.mxu0 0.0
      %371 = vmatprep.subr.mxu0 0.0
      %372 = vmatpush2.msra.mxu0 0.0
      %373 = vmatprep.subr.mxu0 0.0
      %374 = vmatpush2.msra.mxu0 0.0
      %375 = vmatprep.subr.mxu0 0.0
      %376 = vmatpush2.msra.mxu0 0.0
      %377 = vmatprep.subr.mxu0 0.0
      %378 = vmatpush2.msra.mxu0 0.0
      %379 = vmatprep.subr.mxu0 0.0
      %380 = vmatpush2.msra.mxu0 0.0
      %381 = vmatprep.subr.mxu0 0.0
      %382 = vmatpush2.msra.mxu0 0.0
      %383 = vmatprep.subr.mxu0 0.0
      %384 = vmatpush2.msra.mxu0 0.0
      %385 = vmatprep.mubr.f32.mxu0 0.0
      %386 = vmatmul.mubr.f32.gmra.mxu0 %v282
      %v387 = vpop.f32.mrf.mxu0
      %v388 = vadd.f32 %v319, %v387
      %v389 = vpop.f32.mrf.mxu0
      %390 = vmatprep.mubr.f32.mxu0 0.0
      %391 = vmatmul.mubr.f32.gmra.mxu0 %v283
      %v392 = vpop.f32.mrf.mxu0
      %v393 = vadd.f32 %v319, %v392
      %v394 = vpop.f32.mrf.mxu0
      %395 = vmatprep.mubr.f32.mxu0 0.0
      %396 = vmatmul.mubr.f32.gmra.mxu0 %v284
      %v397 = vpop.f32.mrf.mxu0
      %v398 = vadd.f32 %v319, %v397
      %v399 = vpop.f32.mrf.mxu0
      %400 = vmatprep.mubr.f32.mxu0 0.0
      %401 = vmatmul.mubr.f32.gmra.mxu0 %v285
      %v402 = vpop.f32.mrf.mxu0
      %v403 = vadd.f32 %v319, %v402
      %v404 = vpop.f32.mrf.mxu0
      %405 = vmatprep.mubr.f32.mxu0 0.0
      %406 = vmatmul.mubr.f32.gmra.mxu0 %v286
      %v407 = vpop.f32.mrf.mxu0
      %v408 = vadd.f32 %v319, %v407
      %v409 = vpop.f32.mrf.mxu0
      %410 = vmatprep.mubr.f32.mxu0 0.0
      %411 = vmatmul.mubr.f32.gmra.mxu0 %v287
      %v412 = vpop.f32.mrf.mxu0
      %v413 = vadd.f32 %v319, %v412
      %v414 = vpop.f32.mrf.mxu0
      %415 = vmatprep.mubr.f32.mxu0 0.0
      %416 = vmatmul.mubr.f32.gmra.mxu0 %v288
      %v417 = vpop.f32.mrf.mxu0
      %v418 = vadd.f32 %v319, %v417
      %v419 = vpop.f32.mrf.mxu0
      %420 = vmatprep.mubr.f32.mxu0 0.0
      %421 = vmatmul.mubr.f32.gmra.mxu0 %v289
      %v422 = vpop.f32.mrf.mxu0
      %v423 = vadd.f32 %v319, %v422
      %v424 = vpop.f32.mrf.mxu0
      %425 = vmatprep.mubr.f32.mxu0 0.0
      %426 = vmatmul.mubr.f32.gmra.mxu0 %v290
      %v427 = vpop.f32.mrf.mxu0
      %v428 = vadd.f32 %v319, %v427
      %v429 = vpop.f32.mrf.mxu0
      %430 = vmatprep.mubr.f32.mxu0 0.0
      %431 = vmatmul.mubr.f32.gmra.mxu0 %v291
      %v432 = vpop.f32.mrf.mxu0
      %v433 = vadd.f32 %v319, %v432
      %v434 = vpop.f32.mrf.mxu0
      %435 = vmatprep.mubr.f32.mxu0 0.0
      %436 = vmatmul.mubr.f32.gmra.mxu0 %v292
      %v437 = vpop.f32.mrf.mxu0
      %v438 = vadd.f32 %v319, %v437
      %v439 = vpop.f32.mrf.mxu0
      %440 = vmatprep.mubr.f32.mxu0 0.0
      %441 = vmatmul.mubr.f32.gmra.mxu0 %v293
      %v442 = vpop.f32.mrf.mxu0
      %v443 = vadd.f32 %v319, %v442
      %v444 = vpop.f32.mrf.mxu0
      %445 = vmatprep.mubr.f32.mxu0 0.0
      %446 = vmatmul.mubr.f32.gmra.mxu0 %v294
      %v447 = vpop.f32.mrf.mxu0
      %v448 = vadd.f32 %v319, %v447
      %v449 = vpop.f32.mrf.mxu0
      %450 = vmatprep.mubr.f32.mxu0 0.0
      %451 = vmatmul.mubr.f32.gmra.mxu0 %v295
      %v452 = vpop.f32.mrf.mxu0
      %v453 = vadd.f32 %v319, %v452
      %v454 = vpop.f32.mrf.mxu0
      %455 = vmatprep.mubr.f32.mxu0 0.0
      %456 = vmatmul.mubr.f32.gmra.mxu0 %v296
      %v457 = vpop.f32.mrf.mxu0
      %v458 = vadd.f32 %v319, %v457
      %v459 = vpop.f32.mrf.mxu0
      %460 = vmatprep.mubr.f32.mxu0 0.0
      %461 = vmatmul.mubr.f32.gmra.mxu0 %v297
      %v462 = vpop.f32.mrf.mxu0
      %v463 = vadd.f32 %v319, %v462
      %v464 = vpop.f32.mrf.mxu0
      %465 = vdwg.mxu0
      %v466 = vmax.f32 %v388, 0.0
      %v467 = vmax.f32 %v393, 0.0
      %v468 = vmax.f32 %v398, 0.0
      %v469 = vmax.f32 %v403, 0.0
      %v470 = vmax.f32 %v408, 0.0
      %v471 = vmax.f32 %v413, 0.0
      %v472 = vmax.f32 %v418, 0.0
      %v473 = vmax.f32 %v423, 0.0
      %v474 = vmax.f32 %v428, 0.0
      %v475 = vmax.f32 %v433, 0.0
      %v476 = vmax.f32 %v438, 0.0
      %v477 = vmax.f32 %v443, 0.0
      %v478 = vmax.f32 %v448, 0.0
      %v479 = vmax.f32 %v453, 0.0
      %v480 = vmax.f32 %v458, 0.0
      %v481 = vmax.f32 %v463, 0.0
      %v482 = vld [vmem:[%s3] sm:$0xff]
      %v483 = vld [vmem:[%s3 + $0x8] sm:$0xff]
      %v484 = vld [vmem:[%s3 + $0x10] sm:$0xff]
      %v485 = vld [vmem:[%s3 + $0x18] sm:$0xff]
      %v486 = vld [vmem:[%s3 + $0x20] sm:$0xff]
      %v487 = vld [vmem:[%s3 + $0x28] sm:$0xff]
      %v488 = vld [vmem:[%s3 + $0x30] sm:$0xff]
      %v489 = vld [vmem:[%s3 + $0x38] sm:$0xff]
      %v490 = vld [vmem:[%s4] sm:$0x1]
      %v492 = vlaneseq
      %v493 = vshrl.u32 %v492, 7
      %v494 = vsub.s32 0, %v493
      %v495 = vrot.slane %v490, %v494
      %vm497 = vcmask 523264
      %v499 = vsel %vm497, %v466, 0
      %v502 = vsel %vm497, %v467, 0
      %v505 = vsel %vm497, %v468, 0
      %v508 = vsel %vm497, %v469, 0
      %v511 = vsel %vm497, %v470, 0
      %v514 = vsel %vm497, %v471, 0
      %v517 = vsel %vm497, %v472, 0
      %v520 = vsel %vm497, %v473, 0
      %v523 = vsel %vm497, %v474, 0
      %v526 = vsel %vm497, %v475, 0
      %v529 = vsel %vm497, %v476, 0
      %v532 = vsel %vm497, %v477, 0
      %v535 = vsel %vm497, %v478, 0
      %v538 = vsel %vm497, %v479, 0
      %v541 = vsel %vm497, %v480, 0
      %v544 = vsel %vm497, %v481, 0
      %546 = vmatprep.subr.mxu0 0.0
      %547 = vmatpush1.msra.mxu0 0.0
      %548 = vmatprep.subr.mxu0 0.0
      %549 = vmatpush1.msra.mxu0 0.0
      %550 = vmatprep.subr.mxu0 0.0
      %551 = vmatpush1.msra.mxu0 0.0
      %552 = vmatprep.subr.mxu0 0.0
      %553 = vmatpush1.msra.mxu0 0.0
      %554 = vmatprep.subr.mxu0 0.0
      %555 = vmatpush1.msra.mxu0 0.0
      %556 = vmatprep.subr.mxu0 0.0
      %557 = vmatpush1.msra.mxu0 0.0
      %558 = vmatprep.subr.mxu0 0.0
      %559 = vmatpush1.msra.mxu0 0.0
      %560 = vmatprep.subr.mxu0 0.0
      %561 = vmatpush1.msra.mxu0 0.0
      %562 = vmatprep.subr.mxu0 0.0
      %563 = vmatpush1.msra.mxu0 %v489
      %564 = vmatprep.subr.mxu0 0.0
      %565 = vmatpush1.msra.mxu0 %v488
      %566 = vmatprep.subr.mxu0 0.0
      %567 = vmatpush1.msra.mxu0 %v487
      %568 = vmatprep.subr.mxu0 0.0
      %569 = vmatpush1.msra.mxu0 %v486
      %570 = vmatprep.subr.mxu0 0.0
      %571 = vmatpush1.msra.mxu0 %v485
      %572 = vmatprep.subr.mxu0 0.0
      %573 = vmatpush1.msra.mxu0 %v484
      %574 = vmatprep.subr.mxu0 0.0
      %575 = vmatpush1.msra.mxu0 %v483
      %576 = vmatprep.subr.mxu0 0.0
      %577 = vmatpush1.msra.mxu0 %v482
      %578 = vmatprep.subr.mxu0 0.0
      %579 = vmatpush2.msra.mxu0 0.0
      %580 = vmatprep.subr.mxu0 0.0
      %581 = vmatpush2.msra.mxu0 0.0
      %582 = vmatprep.subr.mxu0 0.0
      %583 = vmatpush2.msra.mxu0 0.0
      %584 = vmatprep.subr.mxu0 0.0
      %585 = vmatpush2.msra.mxu0 0.0
      %586 = vmatprep.subr.mxu0 0.0
      %587 = vmatpush2.msra.mxu0 0.0
      %588 = vmatprep.subr.mxu0 0.0
      %589 = vmatpush2.msra.mxu0 0.0
      %590 = vmatprep.subr.mxu0 0.0
      %591 = vmatpush2.msra.mxu0 0.0
      %592 = vmatprep.subr.mxu0 0.0
      %593 = vmatpush2.msra.mxu0 0.0
      %594 = vmatprep.subr.mxu0 0.0
      %595 = vmatpush2.msra.mxu0 0.0
      %596 = vmatprep.subr.mxu0 0.0
      %597 = vmatpush2.msra.mxu0 0.0
      %598 = vmatprep.subr.mxu0 0.0
      %599 = vmatpush2.msra.mxu0 0.0
      %600 = vmatprep.subr.mxu0 0.0
      %601 = vmatpush2.msra.mxu0 0.0
      %602 = vmatprep.subr.mxu0 0.0
      %603 = vmatpush2.msra.mxu0 0.0
      %604 = vmatprep.subr.mxu0 0.0
      %605 = vmatpush2.msra.mxu0 0.0
      %606 = vmatprep.subr.mxu0 0.0
      %607 = vmatpush2.msra.mxu0 0.0
      %608 = vmatprep.subr.mxu0 0.0
      %609 = vmatpush2.msra.mxu0 0.0
      %610 = vmatprep.mubr.f32.mxu0 0.0
      %611 = vmatmul.mubr.f32.gmra.mxu0 %v499
      %v612 = vpop.f32.mrf.mxu0
      %v613 = vadd.f32 %v495, %v612
      %v614 = vpop.f32.mrf.mxu0
      %615 = vmatprep.mubr.f32.mxu0 0.0
      %616 = vmatmul.mubr.f32.gmra.mxu0 %v502
      %v617 = vpop.f32.mrf.mxu0
      %v618 = vadd.f32 %v495, %v617
      %v619 = vpop.f32.mrf.mxu0
      %620 = vmatprep.mubr.f32.mxu0 0.0
      %621 = vmatmul.mubr.f32.gmra.mxu0 %v505
      %v622 = vpop.f32.mrf.mxu0
      %v623 = vadd.f32 %v495, %v622
      %v624 = vpop.f32.mrf.mxu0
      %625 = vmatprep.mubr.f32.mxu0 0.0
      %626 = vmatmul.mubr.f32.gmra.mxu0 %v508
      %v627 = vpop.f32.mrf.mxu0
      %v628 = vadd.f32 %v495, %v627
      %v629 = vpop.f32.mrf.mxu0
      %630 = vmatprep.mubr.f32.mxu0 0.0
      %631 = vmatmul.mubr.f32.gmra.mxu0 %v511
      %v632 = vpop.f32.mrf.mxu0
      %v633 = vadd.f32 %v495, %v632
      %v634 = vpop.f32.mrf.mxu0
      %635 = vmatprep.mubr.f32.mxu0 0.0
      %636 = vmatmul.mubr.f32.gmra.mxu0 %v514
      %v637 = vpop.f32.mrf.mxu0
      %v638 = vadd.f32 %v495, %v637
      %v639 = vpop.f32.mrf.mxu0
      %640 = vmatprep.mubr.f32.mxu0 0.0
      %641 = vmatmul.mubr.f32.gmra.mxu0 %v517
      %v642 = vpop.f32.mrf.mxu0
      %v643 = vadd.f32 %v495, %v642
      %v644 = vpop.f32.mrf.mxu0
      %645 = vmatprep.mubr.f32.mxu0 0.0
      %646 = vmatmul.mubr.f32.gmra.mxu0 %v520
      %v647 = vpop.f32.mrf.mxu0
      %v648 = vadd.f32 %v495, %v647
      %v649 = vpop.f32.mrf.mxu0
      %650 = vmatprep.mubr.f32.mxu0 0.0
      %651 = vmatmul.mubr.f32.gmra.mxu0 %v523
      %v652 = vpop.f32.mrf.mxu0
      %v653 = vadd.f32 %v495, %v652
      %v654 = vpop.f32.mrf.mxu0
      %655 = vmatprep.mubr.f32.mxu0 0.0
      %656 = vmatmul.mubr.f32.gmra.mxu0 %v526
      %v657 = vpop.f32.mrf.mxu0
      %v658 = vadd.f32 %v495, %v657
      %v659 = vpop.f32.mrf.mxu0
      %660 = vmatprep.mubr.f32.mxu0 0.0
      %661 = vmatmul.mubr.f32.gmra.mxu0 %v529
      %v662 = vpop.f32.mrf.mxu0
      %v663 = vadd.f32 %v495, %v662
      %v664 = vpop.f32.mrf.mxu0
      %665 = vmatprep.mubr.f32.mxu0 0.0
      %666 = vmatmul.mubr.f32.gmra.mxu0 %v532
      %v667 = vpop.f32.mrf.mxu0
      %v668 = vadd.f32 %v495, %v667
      %v669 = vpop.f32.mrf.mxu0
      %670 = vmatprep.mubr.f32.mxu0 0.0
      %671 = vmatmul.mubr.f32.gmra.mxu0 %v535
      %v672 = vpop.f32.mrf.mxu0
      %v673 = vadd.f32 %v495, %v672
      %v674 = vpop.f32.mrf.mxu0
      %675 = vmatprep.mubr.f32.mxu0 0.0
      %676 = vmatmul.mubr.f32.gmra.mxu0 %v538
      %v677 = vpop.f32.mrf.mxu0
      %v678 = vadd.f32 %v495, %v677
      %v679 = vpop.f32.mrf.mxu0
      %680 = vmatprep.mubr.f32.mxu0 0.0
      %681 = vmatmul.mubr.f32.gmra.mxu0 %v541
      %v682 = vpop.f32.mrf.mxu0
      %v683 = vadd.f32 %v495, %v682
      %v684 = vpop.f32.mrf.mxu0
      %685 = vmatprep.mubr.f32.mxu0 0.0
      %686 = vmatmul.mubr.f32.gmra.mxu0 %v544
      %v687 = vpop.f32.mrf.mxu0
      %v688 = vadd.f32 %v495, %v687
      %v689 = vpop.f32.mrf.mxu0
      %690 = vdwg.mxu0
      %v691 = vmax.f32 %v613, 0.0
      %v692 = vmax.f32 %v618, 0.0
      %v693 = vmax.f32 %v623, 0.0
      %v694 = vmax.f32 %v628, 0.0
      %v695 = vmax.f32 %v633, 0.0
      %v696 = vmax.f32 %v638, 0.0
      %v697 = vmax.f32 %v643, 0.0
      %v698 = vmax.f32 %v648, 0.0
      %v699 = vmax.f32 %v653, 0.0
      %v700 = vmax.f32 %v658, 0.0
      %v701 = vmax.f32 %v663, 0.0
      %v702 = vmax.f32 %v668, 0.0
      %v703 = vmax.f32 %v673, 0.0
      %v704 = vmax.f32 %v678, 0.0
      %v705 = vmax.f32 %v683, 0.0
      %v706 = vmax.f32 %v688, 0.0
      %v707 = vld [vmem:[%s5] sm:$0xff]
      %v708 = vld [vmem:[%s5 + $0x8] sm:$0xff]
      %v709 = vld [vmem:[%s5 + $0x10] sm:$0xff]
      %v710 = vld [vmem:[%s5 + $0x18] sm:$0xff]
      %v711 = vld [vmem:[%s5 + $0x20] sm:$0xff]
      %v712 = vld [vmem:[%s5 + $0x28] sm:$0xff]
      %v713 = vld [vmem:[%s5 + $0x30] sm:$0xff]
      %v714 = vld [vmem:[%s5 + $0x38] sm:$0xff]
      %v715 = vld [vmem:[%s5 + $0x40] sm:$0xff]
      %v716 = vld [vmem:[%s5 + $0x48] sm:$0xff]
      %v717 = vld [vmem:[%s5 + $0x50] sm:$0xff]
      %v718 = vld [vmem:[%s5 + $0x58] sm:$0xff]
      %v719 = vld [vmem:[%s5 + $0x60] sm:$0xff]
      %v720 = vld [vmem:[%s5 + $0x68] sm:$0xff]
      %v721 = vld [vmem:[%s5 + $0x70] sm:$0xff]
      %v722 = vld [vmem:[%s5 + $0x78] sm:$0xff]
      %v723 = vld [vmem:[%s6] sm:$0x1]
      %v725 = vlaneseq
      %v726 = vshrl.u32 %v725, 7
      %v727 = vsub.s32 0, %v726
      %v728 = vrot.slane %v723, %v727
      %730 = vmatprep.subr.mxu0 0.0
      %731 = vmatpush1.msra.mxu0 %v722
      %732 = vmatprep.subr.mxu0 0.0
      %733 = vmatpush1.msra.mxu0 %v721
      %734 = vmatprep.subr.mxu0 0.0
      %735 = vmatpush1.msra.mxu0 %v720
      %736 = vmatprep.subr.mxu0 0.0
      %737 = vmatpush1.msra.mxu0 %v719
      %738 = vmatprep.subr.mxu0 0.0
      %739 = vmatpush1.msra.mxu0 %v718
      %740 = vmatprep.subr.mxu0 0.0
      %741 = vmatpush1.msra.mxu0 %v717
      %742 = vmatprep.subr.mxu0 0.0
      %743 = vmatpush1.msra.mxu0 %v716
      %744 = vmatprep.subr.mxu0 0.0
      %745 = vmatpush1.msra.mxu0 %v715
      %746 = vmatprep.subr.mxu0 0.0
      %747 = vmatpush1.msra.mxu0 %v714
      %748 = vmatprep.subr.mxu0 0.0
      %749 = vmatpush1.msra.mxu0 %v713
      %750 = vmatprep.subr.mxu0 0.0
      %751 = vmatpush1.msra.mxu0 %v712
      %752 = vmatprep.subr.mxu0 0.0
      %753 = vmatpush1.msra.mxu0 %v711
      %754 = vmatprep.subr.mxu0 0.0
      %755 = vmatpush1.msra.mxu0 %v710
      %756 = vmatprep.subr.mxu0 0.0
      %757 = vmatpush1.msra.mxu0 %v709
      %758 = vmatprep.subr.mxu0 0.0
      %759 = vmatpush1.msra.mxu0 %v708
      %760 = vmatprep.subr.mxu0 0.0
      %761 = vmatpush1.msra.mxu0 %v707
      %762 = vmatprep.subr.mxu0 0.0
      %763 = vmatpush2.msra.mxu0 0.0
      %764 = vmatprep.subr.mxu0 0.0
      %765 = vmatpush2.msra.mxu0 0.0
      %766 = vmatprep.subr.mxu0 0.0
      %767 = vmatpush2.msra.mxu0 0.0
      %768 = vmatprep.subr.mxu0 0.0
      %769 = vmatpush2.msra.mxu0 0.0
      %770 = vmatprep.subr.mxu0 0.0
      %771 = vmatpush2.msra.mxu0 0.0
      %772 = vmatprep.subr.mxu0 0.0
      %773 = vmatpush2.msra.mxu0 0.0
      %774 = vmatprep.subr.mxu0 0.0
      %775 = vmatpush2.msra.mxu0 0.0
      %776 = vmatprep.subr.mxu0 0.0
      %777 = vmatpush2.msra.mxu0 0.0
      %778 = vmatprep.subr.mxu0 0.0
      %779 = vmatpush2.msra.mxu0 0.0
      %780 = vmatprep.subr.mxu0 0.0
      %781 = vmatpush2.msra.mxu0 0.0
      %782 = vmatprep.subr.mxu0 0.0
      %783 = vmatpush2.msra.mxu0 0.0
      %784 = vmatprep.subr.mxu0 0.0
      %785 = vmatpush2.msra.mxu0 0.0
      %786 = vmatprep.subr.mxu0 0.0
      %787 = vmatpush2.msra.mxu0 0.0
      %788 = vmatprep.subr.mxu0 0.0
      %789 = vmatpush2.msra.mxu0 0.0
      %790 = vmatprep.subr.mxu0 0.0
      %791 = vmatpush2.msra.mxu0 0.0
      %792 = vmatprep.subr.mxu0 0.0
      %793 = vmatpush2.msra.mxu0 0.0
      %794 = vmatprep.mubr.f32.mxu0 0.0
      %795 = vmatmul.mubr.f32.gmra.mxu0 %v691
      %v796 = vpop.f32.mrf.mxu0
      %v797 = vadd.f32 %v728, %v796
      %v798 = vpop.f32.mrf.mxu0
      %799 = vmatprep.mubr.f32.mxu0 0.0
      %800 = vmatmul.mubr.f32.gmra.mxu0 %v692
      %v801 = vpop.f32.mrf.mxu0
      %v802 = vadd.f32 %v728, %v801
      %v803 = vpop.f32.mrf.mxu0
      %804 = vmatprep.mubr.f32.mxu0 0.0
      %805 = vmatmul.mubr.f32.gmra.mxu0 %v693
      %v806 = vpop.f32.mrf.mxu0
      %v807 = vadd.f32 %v728, %v806
      %v808 = vpop.f32.mrf.mxu0
      %809 = vmatprep.mubr.f32.mxu0 0.0
      %810 = vmatmul.mubr.f32.gmra.mxu0 %v694
      %v811 = vpop.f32.mrf.mxu0
      %v812 = vadd.f32 %v728, %v811
      %v813 = vpop.f32.mrf.mxu0
      %814 = vmatprep.mubr.f32.mxu0 0.0
      %815 = vmatmul.mubr.f32.gmra.mxu0 %v695
      %v816 = vpop.f32.mrf.mxu0
      %v817 = vadd.f32 %v728, %v816
      %v818 = vpop.f32.mrf.mxu0
      %819 = vmatprep.mubr.f32.mxu0 0.0
      %820 = vmatmul.mubr.f32.gmra.mxu0 %v696
      %v821 = vpop.f32.mrf.mxu0
      %v822 = vadd.f32 %v728, %v821
      %v823 = vpop.f32.mrf.mxu0
      %824 = vmatprep.mubr.f32.mxu0 0.0
      %825 = vmatmul.mubr.f32.gmra.mxu0 %v697
      %v826 = vpop.f32.mrf.mxu0
      %v827 = vadd.f32 %v728, %v826
      %v828 = vpop.f32.mrf.mxu0
      %829 = vmatprep.mubr.f32.mxu0 0.0
      %830 = vmatmul.mubr.f32.gmra.mxu0 %v698
      %v831 = vpop.f32.mrf.mxu0
      %v832 = vadd.f32 %v728, %v831
      %v833 = vpop.f32.mrf.mxu0
      %834 = vmatprep.mubr.f32.mxu0 0.0
      %835 = vmatmul.mubr.f32.gmra.mxu0 %v699
      %v836 = vpop.f32.mrf.mxu0
      %v837 = vadd.f32 %v728, %v836
      %v838 = vpop.f32.mrf.mxu0
      %839 = vmatprep.mubr.f32.mxu0 0.0
      %840 = vmatmul.mubr.f32.gmra.mxu0 %v700
      %v841 = vpop.f32.mrf.mxu0
      %v842 = vadd.f32 %v728, %v841
      %v843 = vpop.f32.mrf.mxu0
      %844 = vmatprep.mubr.f32.mxu0 0.0
      %845 = vmatmul.mubr.f32.gmra.mxu0 %v701
      %v846 = vpop.f32.mrf.mxu0
      %v847 = vadd.f32 %v728, %v846
      %v848 = vpop.f32.mrf.mxu0
      %849 = vmatprep.mubr.f32.mxu0 0.0
      %850 = vmatmul.mubr.f32.gmra.mxu0 %v702
      %v851 = vpop.f32.mrf.mxu0
      %v852 = vadd.f32 %v728, %v851
      %v853 = vpop.f32.mrf.mxu0
      %854 = vmatprep.mubr.f32.mxu0 0.0
      %855 = vmatmul.mubr.f32.gmra.mxu0 %v703
      %v856 = vpop.f32.mrf.mxu0
      %v857 = vadd.f32 %v728, %v856
      %v858 = vpop.f32.mrf.mxu0
      %859 = vmatprep.mubr.f32.mxu0 0.0
      %860 = vmatmul.mubr.f32.gmra.mxu0 %v704
      %v861 = vpop.f32.mrf.mxu0
      %v862 = vadd.f32 %v728, %v861
      %v863 = vpop.f32.mrf.mxu0
      %864 = vmatprep.mubr.f32.mxu0 0.0
      %865 = vmatmul.mubr.f32.gmra.mxu0 %v705
      %v866 = vpop.f32.mrf.mxu0
      %v867 = vadd.f32 %v728, %v866
      %v868 = vpop.f32.mrf.mxu0
      %869 = vmatprep.mubr.f32.mxu0 0.0
      %870 = vmatmul.mubr.f32.gmra.mxu0 %v706
      %v871 = vpop.f32.mrf.mxu0
      %v872 = vadd.f32 %v728, %v871
      %v873 = vpop.f32.mrf.mxu0
      %874 = vdwg.mxu0
      %v875 = vmax.f32 %v797, 0.0
      %v876 = vmax.f32 %v802, 0.0
      %v877 = vmax.f32 %v807, 0.0
      %v878 = vmax.f32 %v812, 0.0
      %v879 = vmax.f32 %v817, 0.0
      %v880 = vmax.f32 %v822, 0.0
      %v881 = vmax.f32 %v827, 0.0
      %v882 = vmax.f32 %v832, 0.0
      %v883 = vmax.f32 %v837, 0.0
      %v884 = vmax.f32 %v842, 0.0
      %v885 = vmax.f32 %v847, 0.0
      %v886 = vmax.f32 %v852, 0.0
      %v887 = vmax.f32 %v857, 0.0
      %v888 = vmax.f32 %v862, 0.0
      %v889 = vmax.f32 %v867, 0.0
      %v890 = vmax.f32 %v872, 0.0
      %vm891 = vcmask 31744
      %892 = vst.msk [vmem:[%s280] sm:$0xff] %vm891, %v875
      %893 = vst.msk [vmem:[%s280 + $0x8] sm:$0xff] %vm891, %v876
      %894 = vst.msk [vmem:[%s280 + $0x10] sm:$0xff] %vm891, %v877
      %895 = vst.msk [vmem:[%s280 + $0x18] sm:$0xff] %vm891, %v878
      %896 = vst.msk [vmem:[%s280 + $0x20] sm:$0xff] %vm891, %v879
      %897 = vst.msk [vmem:[%s280 + $0x28] sm:$0xff] %vm891, %v880
      %898 = vst.msk [vmem:[%s280 + $0x30] sm:$0xff] %vm891, %v881
      %899 = vst.msk [vmem:[%s280 + $0x38] sm:$0xff] %vm891, %v882
      %900 = vst.msk [vmem:[%s280 + $0x40] sm:$0xff] %vm891, %v883
      %901 = vst.msk [vmem:[%s280 + $0x48] sm:$0xff] %vm891, %v884
      %902 = vst.msk [vmem:[%s280 + $0x50] sm:$0xff] %vm891, %v885
      %903 = vst.msk [vmem:[%s280 + $0x58] sm:$0xff] %vm891, %v886
      %904 = vst.msk [vmem:[%s280 + $0x60] sm:$0xff] %vm891, %v887
      %905 = vst.msk [vmem:[%s280 + $0x68] sm:$0xff] %vm891, %v888
      %906 = vst.msk [vmem:[%s280 + $0x70] sm:$0xff] %vm891, %v889
      %907 = vst.msk [vmem:[%s280 + $0x78] sm:$0xff] %vm891, %v890
      %s908 = smul.u32 16, %s18
      %p909 = scmp.lt.s32.totalorder %s908, 31
      %s910 = scalar_select %p909, %s908, 31
      %s911 = smul.addr %s910, 8
      %s912 = scalar_lea.vmem %s7, %s911
      // Predicated region
      $region49: #{feed_forward_model.1} parent=47 // pred_check
        %p913 = pneg %p188
      $region50: #{feed_forward_model.1} parent=47 // pred_check_branch
        %915 = sbr.rel (%p913) target = $region52
      $region51: #{feed_forward_model.1} parent=47 // pred_region
        %s916 = smul.u32 16, %s18
      $region52: #{feed_forward_model.1} parent=47 // pred_fallthru
        _
    $region48: #{feed_forward_model.1} parent=5 // pred_fallthru
      _
    %p917 = scmp.le.s32.totalorder 2, %s13
    // Predicated region
    $region53: #{feed_forward_model.1} parent=5 // pred_check
      %p918 = pneg %p917
    $region54: #{feed_forward_model.1} parent=5 // pred_check_branch
      %920 = sbr.rel (%p918) target = $region56
    $region55: #{feed_forward_model.1} parent=5 // pred_region
      %s921 = ssub.s32 %s13, 2
      // Predicated region
      $region57: #{feed_forward_model.1} parent=55 // pred_check
        %p922 = pneg %p194
      $region58: #{feed_forward_model.1} parent=55 // pred_check_branch
        %924 = sbr.rel (%p922) target = $region60
      $region59: #{feed_forward_model.1} parent=55 // pred_region
        %s925 = smul.u32 16, %s19
        %p926 = scmp.lt.s32.totalorder %s925, 31
        %s927 = scalar_select %p926, %s925, 31
        %s928 = smul.addr %s927, 8
        %s929 = scalar_lea.vmem %s7, %s928
      $region60: #{feed_forward_model.1} parent=55 // pred_fallthru
        _
    $region56: #{feed_forward_model.1} parent=5 // pred_fallthru
      _
  $region6: #{feed_forward_model.1} parent=0 // loop_footer
    %s17 = sadd.s32 1, %s13
  $region7: #{feed_forward_model.1} parent=0 // loop_footer_branch
    %12 = sbr.rel target = $region3
  $region8: #{feed_forward_model.1} parent=0 // loop_exit
    _

</llo_original>
